<compile_context>
chip_gen: v7x
topology: tpu7x:2x2x1
jax: 0.10.0
libtpu: 0.0.40
codegen_flags: <defaults>
</compile_context>

<pallas_src>
import functools

import jax
import jax.numpy as jnp
from jax.experimental import pallas as pl
from jax.experimental.pallas import tpu as pltpu


_VMEM_LIMIT_BYTES = 48 * 1024 * 1024   # > 32 MiB default scoped, < v7x 64 MiB physical
_MAX_BLOCK_BYTES = 8 * 1024 * 1024     # per-block cap (double-buffered in+out stays small)


def _choose_hw_tile(hw: int, c: int, itemsize: int) -> int:
    """Pick an HW tile: a multiple-of-128 divisor of hw capped by block bytes."""
    if hw % 128 != 0:
        # Non-128-multiple spatial sizes: use a full-extent block (still legal).
        return hw
    max_lanes = (_MAX_BLOCK_BYTES // max(1, c * itemsize)) // 128 * 128
    max_lanes = max(128, min(2048, max_lanes))
    t = min(hw, max_lanes)
    while hw % t != 0:
        t -= 128
    return t


# ----------------- pass 1: global average pool, tiled over HW ----------------

def _pool_kernel(x_ref, mean_ref, *, inv_hw):
    # x_ref: (1, C, T) network dtype; mean_ref: (1, 1, C) f32, resident across
    # the HW-tile grid axis (output block index constant in t -> accumulator).
    t = pl.program_id(1)

    @pl.when(t == 0)
    def _():
        mean_ref[...] = jnp.zeros_like(mean_ref)

    # accumulate the spatial sum in f32 regardless of storage dtype
    part = jnp.sum(x_ref[...].astype(jnp.float32), axis=-1)        # (1, C)
    mean_ref[...] += part.reshape(1, 1, part.shape[-1])

    @pl.when(t == pl.num_programs(1) - 1)
    def _():
        mean_ref[...] = mean_ref[...] * inv_hw


# ----------------- batched squeeze / excite FCs (all N at once) ---------------

def _fc_kernel(s_ref, w1_ref, b1_ref, w2_ref, b2_ref, g_ref):
    s = s_ref[...]                                                  # (N, C) f32
    h = jnp.dot(s, w1_ref[...], preferred_element_type=jnp.float32) + b1_ref[...]
    h = h * jax.nn.sigmoid(h)                                       # SiLU
    g = jnp.dot(h, w2_ref[...], preferred_element_type=jnp.float32) + b2_ref[...]
    g_ref[...] = jax.nn.sigmoid(g).astype(g_ref.dtype)              # back to x dtype


# ----------------- pass 2: broadcast scale x * g, tiled over HW ---------------

def _scale_kernel(g_ref, x_ref, o_ref):
    # g_ref: (1, C, 1); x_ref/o_ref: (1, C, T) -> cheap lane broadcast
    o_ref[...] = x_ref[...] * g_ref[...]


def squeeze_excitation(x_nchw, w1, b1, w2, b2):
    """SqueezeExcitation forward.

    x_nchw: (N, C_exp, H, W), any float dtype (kept end-to-end)
    w1: (C_exp, C_sq)   (PyTorch fc1.weight[:, :, 0, 0].T)
    b1: (C_sq,)
    w2: (C_sq, C_exp)   (PyTorch fc2.weight[:, :, 0, 0].T)
    b2: (C_exp,)
    """
    N, C, H, W = x_nchw.shape
    HW = H * W
    Csq = w1.shape[1]
    dtype = x_nchw.dtype

    x = x_nchw.reshape(N, C, HW)                     # no dtype conversion
    T = _choose_hw_tile(HW, C, jnp.dtype(dtype).itemsize)
    n_t = HW // T

    # ---- pass 1: pooled means (N, 1, C), f32 accumulation -------------------
    means = pl.pallas_call(
        functools.partial(_pool_kernel, inv_hw=1.0 / HW),
        out_shape=jax.ShapeDtypeStruct((N, 1, C), jnp.float32),
        grid_spec=pltpu.PrefetchScalarGridSpec(
            num_scalar_prefetch=0,
            grid=(N, n_t),
            in_specs=[pl.BlockSpec((1, C, T), lambda n, t: (n, 0, t))],
            out_specs=pl.BlockSpec((1, 1, C), lambda n, t: (n, 0, 0)),
        ),
        compiler_params=pltpu.CompilerParams(
            dimension_semantics=("parallel", "arbitrary"),
            vmem_limit_bytes=_VMEM_LIMIT_BYTES),
    )(x)

    # ---- batched FCs: single tiny kernel, whole arrays in VMEM --------------
    g = pl.pallas_call(
        _fc_kernel,
        out_shape=jax.ShapeDtypeStruct((N, C), dtype),
    )(means.reshape(N, C),
      w1.astype(jnp.float32), b1.reshape(1, Csq).astype(jnp.float32),
      w2.astype(jnp.float32), b2.reshape(1, C).astype(jnp.float32))

    # ---- pass 2: tiled scale x * g ------------------------------------------
    out = pl.pallas_call(
        _scale_kernel,
        out_shape=jax.ShapeDtypeStruct((N, C, HW), dtype),
        grid_spec=pltpu.PrefetchScalarGridSpec(
            num_scalar_prefetch=0,
            grid=(N, n_t),
            in_specs=[
                pl.BlockSpec((1, C, 1), lambda n, t: (n, 0, 0)),
                pl.BlockSpec((1, C, T), lambda n, t: (n, 0, t)),
            ],
            out_specs=pl.BlockSpec((1, C, T), lambda n, t: (n, 0, t)),
        ),
        compiler_params=pltpu.CompilerParams(
            dimension_semantics=("parallel", "parallel"),
            vmem_limit_bytes=_VMEM_LIMIT_BYTES),
    )(g.reshape(N, C, 1), x)

    return out.reshape(N, C, H, W)


def _reference(x_nchw, w1, b1, w2, b2):
    # pure-JAX reference of the PyTorch forward (computed in f32)
    xf = x_nchw.astype(jnp.float32)
    s = jnp.mean(xf, axis=(2, 3))                                   # (N, C)
    h = s @ w1 + b1
    h = h * jax.nn.sigmoid(h)
    g = jax.nn.sigmoid(h @ w2 + b2)                                 # (N, C)
    return xf * g[:, :, None, None]


if __name__ == "__main__":
    # Module config: SqueezeExcitation(input_c=8, expand_c=16, squeeze_factor=4)
    input_c, expand_c, squeeze_factor = 8, 16, 4
    squeeze_c = input_c // squeeze_factor                           # = 2

    N, H, W = 2, 16, 16
    key = jax.random.PRNGKey(0)
    kx, k1, kb1, k2, kb2 = jax.random.split(key, 5)

    x = jax.random.normal(kx, (N, expand_c, H, W), dtype=jnp.float32)

    # PyTorch fc1.weight: (squeeze_c, expand_c, 1, 1) -> matmul form (expand_c, squeeze_c)
    fc1_w = jax.random.normal(k1, (squeeze_c, expand_c), dtype=jnp.float32) * 0.1
    fc1_b = jax.random.normal(kb1, (squeeze_c,), dtype=jnp.float32) * 0.1
    # PyTorch fc2.weight: (expand_c, squeeze_c, 1, 1) -> matmul form (squeeze_c, expand_c)
    fc2_w = jax.random.normal(k2, (expand_c, squeeze_c), dtype=jnp.float32) * 0.1
    fc2_b = jax.random.normal(kb2, (expand_c,), dtype=jnp.float32) * 0.1

    w1 = fc1_w.T   # (expand_c, squeeze_c)
    w2 = fc2_w.T   # (squeeze_c, expand_c)

    # f32 path
    out = jax.block_until_ready(squeeze_excitation(x, w1, fc1_b, w2, fc2_b))
    ref = _reference(x, w1, fc1_b, w2, fc2_b)
    assert out.shape == (N, expand_c, H, W)
    assert out.dtype == x.dtype
    assert jnp.allclose(out, ref, atol=1e-5, rtol=1e-5), "f32 mismatch vs reference"

    # bf16 path: storage dtype preserved end-to-end, pooled sum still f32
    x_bf16 = x.astype(jnp.bfloat16)
    out_bf16 = jax.block_until_ready(squeeze_excitation(x_bf16, w1, fc1_b, w2, fc2_b))
    ref_bf16 = _reference(x_bf16, w1, fc1_b, w2, fc2_b)
    assert out_bf16.dtype == jnp.bfloat16
    assert jnp.allclose(out_bf16.astype(jnp.float32), ref_bf16, atol=3e-2, rtol=3e-2), \
        "bf16 mismatch vs reference"

    print("KERNEL_OK")
</pallas_src>

<mosaic_0001>
module attributes {stable_mosaic.version = 11 : i64} {
  func.func @_pool_kernel(%arg0: i32, %arg1: i32, %arg2: memref<1x16x256xf32, #tpu.memory_space<vmem>>, %arg3: memref<1x1x16xf32, #tpu.memory_space<vmem>>) attributes {dimension_semantics = [#tpu.dimension_semantics<parallel>, #tpu.dimension_semantics<arbitrary>], iteration_bounds = array<i64: 2, 1>, scalar_prefetch = 0 : i64, scratch_operands = 0 : i64, tpu.core_type = #tpu.core_type<tc>, window_params = [{transform_indices = @transform_0, window_bounds = array<i64: 1, 16, 256>}, {transform_indices = @transform_1, window_bounds = array<i64: 1, 1, 16>}]} {
    %c0_i32 = arith.constant 0 : i32
    %0 = arith.cmpi eq, %arg1, %c0_i32 : i32
    %1 = arith.extui %0 : i1 to i32
    %c0_i32_0 = arith.constant 0 : i32
    %2 = arith.cmpi ne, %1, %c0_i32_0 : i32
    scf.if %2 {
      %cst_11 = arith.constant 0.000000e+00 : f32
      %12 = vector.broadcast %cst_11 : f32 to vector<1x1x16xf32>
      %c0_12 = arith.constant 0 : index
      %c0_13 = arith.constant 0 : index
      %c0_14 = arith.constant 0 : index
      %13 = vector.load %arg3[%c0_12, %c0_13, %c0_14] : memref<1x1x16xf32, #tpu.memory_space<vmem>>, vector<1x1x16xf32>
      tpu.vector_store %arg3[%c0_12, %c0_13, %c0_14], %12 {strides = array<i32>} : memref<1x1x16xf32, #tpu.memory_space<vmem>>, vector<1x1x16xf32>,
    } else {
    }
    %c0 = arith.constant 0 : index
    %c0_1 = arith.constant 0 : index
    %c0_2 = arith.constant 0 : index
    %3 = vector.load %arg2[%c0, %c0_1, %c0_2] : memref<1x16x256xf32, #tpu.memory_space<vmem>>, vector<1x16x256xf32>
    %cst = arith.constant dense<0.000000e+00> : vector<1x16xf32>
    %4 = vector.multi_reduction <add>, %3, %cst [2] : vector<1x16x256xf32> to vector<1x16xf32>
    %c0_3 = arith.constant 0 : index
    %c0_4 = arith.constant 0 : index
    %c0_5 = arith.constant 0 : index
    %5 = vector.load %arg3[%c0_3, %c0_4, %c0_5] : memref<1x1x16xf32, #tpu.memory_space<vmem>>, vector<1x1x16xf32>
    %6 = vector.shape_cast %4 : vector<1x16xf32> to vector<1x1x16xf32>
    %7 = arith.addf %5, %6 : vector<1x1x16xf32>
    %c0_6 = arith.constant 0 : index
    %c0_7 = arith.constant 0 : index
    %c0_8 = arith.constant 0 : index
    %8 = vector.load %arg3[%c0_6, %c0_7, %c0_8] : memref<1x1x16xf32, #tpu.memory_space<vmem>>, vector<1x1x16xf32>
    tpu.vector_store %arg3[%c0_6, %c0_7, %c0_8], %7 {strides = array<i32>} : memref<1x1x16xf32, #tpu.memory_space<vmem>>, vector<1x1x16xf32>,
    %c0_i32_9 = arith.constant 0 : i32
    %9 = arith.cmpi eq, %arg1, %c0_i32_9 : i32
    %10 = arith.extui %9 : i1 to i32
    %c0_i32_10 = arith.constant 0 : i32
    %11 = arith.cmpi ne, %10, %c0_i32_10 : i32
    scf.if %11 {
      %c0_11 = arith.constant 0 : index
      %c0_12 = arith.constant 0 : index
      %c0_13 = arith.constant 0 : index
      %12 = vector.load %arg3[%c0_11, %c0_12, %c0_13] : memref<1x1x16xf32, #tpu.memory_space<vmem>>, vector<1x1x16xf32>
      %cst_14 = arith.constant 3.906250e-03 : f32
      %13 = vector.broadcast %cst_14 : f32 to vector<1x1x16xf32>
      %14 = arith.mulf %12, %13 : vector<1x1x16xf32>
      %c0_15 = arith.constant 0 : index
      %c0_16 = arith.constant 0 : index
      %c0_17 = arith.constant 0 : index
      %15 = vector.load %arg3[%c0_15, %c0_16, %c0_17] : memref<1x1x16xf32, #tpu.memory_space<vmem>>, vector<1x1x16xf32>
      tpu.vector_store %arg3[%c0_15, %c0_16, %c0_17], %14 {strides = array<i32>} : memref<1x1x16xf32, #tpu.memory_space<vmem>>, vector<1x1x16xf32>,
    } else {
    }
    return
  }
  func.func @transform_0(%arg0: i32, %arg1: i32) -> (i32, i32, i32) {
    %c0_i32 = arith.constant 0 : i32
    %c0_i32_0 = arith.constant 0 : i32
    return %arg0, %c0_i32, %arg1 : i32, i32, i32
  }
  func.func @transform_1(%arg0: i32, %arg1: i32) -> (i32, i32, i32) {
    %c0_i32 = arith.constant 0 : i32
    %c0_i32_0 = arith.constant 0 : i32
    %c0_i32_1 = arith.constant 0 : i32
    return %arg0, %c0_i32, %c0_i32_0 : i32, i32, i32
  }
}

</mosaic_0001>

<llo_original>
// kernel: tpu_custom_call.1
$region0: #{tpu_custom_call.1}
  #allocation0 [shape = 'u32[]', space=smem, size = 0x4, offset = 0x4, fixed_abs, tag = 'smem constant byte address 0x4 - core index']
  #allocation1 [shape = 'u32[144,128]{1,0:T(1,128)}', space=vmem, size = 0x12000, scoped, tag = 'internal scratch']
  %s0 = inlined_call_operand.hbm [shape: f32[2,16,256], index: 0, kind: input, shape index: {}]
  %s1 = inlined_call_operand.hbm [shape: f32[2,1,16], index: 1, kind: output, shape index: {}]
  %s2 = sld [smem:[#allocation0]]
  $region49: #{tpu_custom_call.1} parent=0
    _
  %s4 = ssub.s32 1, %s2
  %s5 = scalar_select 0, %s4, %s2
  $region1: #{tpu_custom_call.1} parent=0
    #allocation2 [shape = 'u8[32768]{0}', space=vmem, size = 0x8000, scoped, tag = 'input window, operand 0']
    #allocation3 [shape = 's32[2]{0}', space=sflag, size = 0x8, scoped, tag = 'scoped memory for tpu_custom_call.1']
    #allocation4 [shape = 's32[2]{0}', space=sflag, size = 0x8, scoped, tag = 'scoped memory for tpu_custom_call.1']
    #allocation5 [shape = 'u8[1024]{0}', space=vmem, size = 0x400, scoped, tag = 'output window, operand 0']
    %6 = vsyncpa [#allocation3], 0
    %s7 = scalar_lea.sflag [#allocation3], 1
    %8 = vsyncpa %s7, 0
    %9 = vsyncpa [#allocation4], 0
    %s10 = scalar_lea.sflag [#allocation4], 1
    %11 = vsyncpa %s10, 0
    loop: start=0, step=1, limit=4
    $region2: #{tpu_custom_call.1} parent=1 // loop_pre_header
      _
    $region3: #{tpu_custom_call.1} parent=1 // loop_header
      %s13 = sphi 0, %s17
      %p14 = scmp.ge.s32.totalorder %s13, 4
      %s20 = sphi 0, %s32
      %s21 = sphi 0, %s28
      %s22 = sphi 0, %s20
      %s23 = sphi 0, %s21
      %s24 = sphi 0, %s22
      %s25 = sphi 0, %s23
      %s37 = sphi 0, %s39
      %s40 = sphi 0, %s37
      %s41 = sphi 0, %s40
      %s57 = sphi 0, %s41
      %s63 = sphi 0, %s65
      %s66 = sphi 0, %s63
      %s67 = sphi 0, %s66
      %s83 = sphi 0, %s67
    $region4: #{tpu_custom_call.1} parent=1 // loop_header_branch
      %16 = sbr.rel (%p14) target = $region8
    $region5: #{tpu_custom_call.1} parent=1 // loop_body
      %s18 = ssub.s32 %s13, 1
      %s19 = ssub.s32 %s13, 2
      %s26 = sadd.s32 1, %s21
      %p27 = scmp.ge.s32.totalorder %s26, 1
      %s28 = scalar_select %p27, 0, %s26
      %s29 = sadd.s32 1, %s20
      %s30 = scalar_select %p27, %s29, %s20
      %p31 = scmp.ge.s32.totalorder %s30, 2
      %s32 = scalar_select %p31, 0, %s30
      %s33 = ssub.s32 %s20, %s32
      %s34 = ssub.s32 %s21, %s28
      %s35 = sor.u32 %s33, %s34
      %p36 = scmp.eq.s32.totalorder %s35, 0
      %s38 = sadd.s32 %s37, 1
      %s39 = scalar_select %p36, %s37, %s38
      %p42 = pneg %p36
      %p43 = scmp.eq.s32.totalorder %s13, 1
      %p44 = por %p42, %p43
      %p45 = scmp.ne.s32.totalorder %s37, %s40
      %p46 = scmp.eq.s32.totalorder %s13, 0
      %p47 = por %p45, %p46
      %p48 = scmp.ne.s32.totalorder %s37, %s40
      %p49 = scmp.eq.s32.totalorder %s18, 1
      %p50 = por %p48, %p49
      %p51 = scmp.ne.s32.totalorder %s40, %s41
      %p52 = scmp.eq.s32.totalorder %s18, 0
      %p53 = por %p51, %p52
      %p54 = scmp.ne.s32.totalorder %s40, %s41
      %p55 = scmp.eq.s32.totalorder %s19, 1
      %p56 = por %p54, %p55
      %p58 = scmp.ne.s32.totalorder %s41, %s57
      %p59 = scmp.eq.s32.totalorder %s19, 0
      %p60 = por %p58, %p59
      %s61 = ssub.s32 %s20, %s32
      %p62 = scmp.eq.s32.totalorder %s61, 0
      %s64 = sadd.s32 %s63, 1
      %s65 = scalar_select %p62, %s63, %s64
      %p68 = pneg %p62
      %p69 = scmp.eq.s32.totalorder %s13, 1
      %p70 = por %p68, %p69
      %p71 = scmp.ne.s32.totalorder %s63, %s66
      %p72 = scmp.eq.s32.totalorder %s13, 0
      %p73 = por %p71, %p72
      %p74 = scmp.ne.s32.totalorder %s63, %s66
      %p75 = scmp.eq.s32.totalorder %s18, 1
      %p76 = por %p74, %p75
      %p77 = scmp.ne.s32.totalorder %s66, %s67
      %p78 = scmp.eq.s32.totalorder %s18, 0
      %p79 = por %p77, %p78
      %p80 = scmp.ne.s32.totalorder %s66, %s67
      %p81 = scmp.eq.s32.totalorder %s19, 1
      %p82 = por %p80, %p81
      %p84 = scmp.ne.s32.totalorder %s67, %s83
      %p85 = scmp.eq.s32.totalorder %s19, 0
      %p86 = por %p84, %p85
      %p87 = scmp.le.s32.totalorder 1, %s13
      %p88 = scmp.lt.s32.totalorder %s13, 3
      %p89 = pnand %p87, %p88
      %p90 = pneg %p89
      // Predicated region
      $region9: #{tpu_custom_call.1} parent=5 // pred_check
        _
      $region10: #{tpu_custom_call.1} parent=5 // pred_check_branch
        %92 = sbr.rel (%p89) target = $region12
      $region11: #{tpu_custom_call.1} parent=5 // pred_region
        %s93 = ssub.s32 %s13, 1
      $region12: #{tpu_custom_call.1} parent=5 // pred_fallthru
        _
      %p94 = scmp.lt.s32.totalorder %s13, 2
      // Predicated region
      $region13: #{tpu_custom_call.1} parent=5 // pred_check
        %p95 = pneg %p94
      $region14: #{tpu_custom_call.1} parent=5 // pred_check_branch
        %97 = sbr.rel (%p95) target = $region16
      $region15: #{tpu_custom_call.1} parent=5 // pred_region
        // Predicated region
        $region17: #{tpu_custom_call.1} parent=15 // pred_check
          %p98 = pneg %p47
        $region18: #{tpu_custom_call.1} parent=15 // pred_check_branch
          %100 = sbr.rel (%p98) target = $region20
        $region19: #{tpu_custom_call.1} parent=15 // pred_region
          %s101 = sand.u32 %s37, 1
          %s102 = scalar_lea.sflag [#allocation3], %s101
          %s103 = sand.u32 %s37, 1
          %s104 = smul.addr %s103, 32
          %s105 = scalar_lea.vmem [#allocation2], %s104
          %s106 = smul.u32 2, %s21
          %s108 = ssub.s32 512, 512
          %109 = vsyncadd %s102, %s108
          %s110 = smul.addr %s20, 4
          %s111 = sadd.s32 %s106, %s110
          %s112 = smul.addr %s111, 128
          %s113 = scalar_lea.hbm %s0, %s112
          %s114 = sshll.u32 %s105, 4
          %s115 = int_to_ptr.vmem [resolvable:$true] %s114
          %120 = dma.hbm_to_vmem [thread:$0]  %s113, 512, %s115, %s102, 256, 256, 16
        $region20: #{tpu_custom_call.1} parent=15 // pred_fallthru
          _
      $region16: #{tpu_custom_call.1} parent=5 // pred_fallthru
        _
      %p121 = scmp.le.s32.totalorder 1, %s13
      %p122 = scmp.lt.s32.totalorder %s13, 3
      %p123 = pnand %p121, %p122
      %p124 = pneg %p123
      // Predicated region
      $region21: #{tpu_custom_call.1} parent=5 // pred_check
        _
      $region22: #{tpu_custom_call.1} parent=5 // pred_check_branch
        %126 = sbr.rel (%p123) target = $region24
      $region23: #{tpu_custom_call.1} parent=5 // pred_region
        %s127 = ssub.s32 %s13, 1
        %s128 = sand.u32 %s40, 1
        %s129 = scalar_lea.sflag [#allocation3], %s128
        %s130 = sand.u32 %s40, 1
        %s131 = smul.addr %s130, 32
        %s132 = scalar_lea.vmem [#allocation2], %s131
        // Predicated region
        $region25: #{tpu_custom_call.1} parent=23 // pred_check
          %p133 = pneg %p53
        $region26: #{tpu_custom_call.1} parent=23 // pred_check_branch
          %135 = sbr.rel (%p133) target = $region28
        $region27: #{tpu_custom_call.1} parent=23 // pred_region
          %136 = dma.done %s129, 512
        $region28: #{tpu_custom_call.1} parent=23 // pred_fallthru
          _
        %s137 = sand.u32 %s40, 1
        %s138 = scalar_lea.sflag [#allocation3], %s137
        %s139 = sand.u32 %s40, 1
        %s140 = smul.addr %s139, 32
        %s141 = scalar_lea.vmem [#allocation2], %s140
        %p142 = pneg %p53
        %p143 = pneg %p50
        %p144 = pneg %p79
        %p145 = pneg %p76
        %s146 = sand.u32 %s66, 1
        %s147 = scalar_lea.sflag [#allocation4], %s146
        %s148 = sand.u32 %s66, 1
        %s149 = scalar_lea.vmem [#allocation5], %s148
        %s150 = smul.u32 2, %s23
        %p151 = scmp.eq.s32.totalorder %s23, 0
        // Predicated region
        $region29: #{tpu_custom_call.1} parent=23 // pred_check
          %p152 = pneg %p151
        $region30: #{tpu_custom_call.1} parent=23 // pred_check_branch
          %154 = sbr.rel (%p152) target = $region32
        $region31: #{tpu_custom_call.1} parent=23 // pred_region
          %vm155 = vcmask 122880
          %156 = vst.msk [vmem:[%s149] sm:$0x1] %vm155, 0.0
        $region32: #{tpu_custom_call.1} parent=23 // pred_fallthru
          _
        %v157 = vld [vmem:[%s132] sm:$0xff]
        %v158 = vld [vmem:[%s132 + $0x8] sm:$0xff]
        %v159 = vld [vmem:[%s132 + $0x10] sm:$0xff]
        %v160 = vld [vmem:[%s132 + $0x18] sm:$0xff]
        %v161 = vadd.f32 %v157, %v158
        %162 = vadd.xlane.f32.xlu0 %v161
        %v163 = vpop.xlane.xlu0 %162
        %v164 = vadd.f32 %v159, %v160
        %165 = vadd.xlane.f32.xlu0 %v164
        %v166 = vpop.xlane.xlu0 %165
        %v167 = vld [vmem:[%s149] sm:$0x1]
        %v170 = vlaneseq
        %v171 = vshrl.u32 %v170, 7
        %v172 = vsub.s32 0, %v171
        %v173 = vrot.slane %v163, %v172
        %v174 = vlaneseq
        %v175 = vshrl.u32 %v174, 7
        %v176 = vsub.s32 1, %v175
        %v177 = vrot.slane %v163, %v176
        %v178 = vlaneseq
        %v179 = vshrl.u32 %v178, 7
        %v180 = vsub.s32 2, %v179
        %v181 = vrot.slane %v163, %v180
        %v182 = vlaneseq
        %v183 = vshrl.u32 %v182, 7
        %v184 = vsub.s32 3, %v183
        %v185 = vrot.slane %v163, %v184
        %v186 = vlaneseq
        %v187 = vshrl.u32 %v186, 7
        %v188 = vsub.s32 4, %v187
        %v189 = vrot.slane %v163, %v188
        %v190 = vlaneseq
        %v191 = vshrl.u32 %v190, 7
        %v192 = vsub.s32 5, %v191
        %v193 = vrot.slane %v163, %v192
        %v194 = vlaneseq
        %v195 = vshrl.u32 %v194, 7
        %v196 = vsub.s32 6, %v195
        %v197 = vrot.slane %v163, %v196
        %v198 = vlaneseq
        %v199 = vshrl.u32 %v198, 7
        %v200 = vsub.s32 7, %v199
        %v201 = vrot.slane %v163, %v200
        %v202 = vlaneseq
        %v203 = vshrl.u32 %v202, 7
        %v204 = vsub.s32 0, %v203
        %v205 = vrot.slane %v166, %v204
        %v206 = vlaneseq
        %v207 = vshrl.u32 %v206, 7
        %v208 = vsub.s32 1, %v207
        %v209 = vrot.slane %v166, %v208
        %v210 = vlaneseq
        %v211 = vshrl.u32 %v210, 7
        %v212 = vsub.s32 2, %v211
        %v213 = vrot.slane %v166, %v212
        %v214 = vlaneseq
        %v215 = vshrl.u32 %v214, 7
        %v216 = vsub.s32 3, %v215
        %v217 = vrot.slane %v166, %v216
        %v218 = vlaneseq
        %v219 = vshrl.u32 %v218, 7
        %v220 = vsub.s32 4, %v219
        %v221 = vrot.slane %v166, %v220
        %v222 = vlaneseq
        %v223 = vshrl.u32 %v222, 7
        %v224 = vsub.s32 5, %v223
        %v225 = vrot.slane %v166, %v224
        %v226 = vlaneseq
        %v227 = vshrl.u32 %v226, 7
        %v228 = vsub.s32 6, %v227
        %v229 = vrot.slane %v166, %v228
        %v230 = vlaneseq
        %v231 = vshrl.u32 %v230, 7
        %v232 = vsub.s32 7, %v231
        %v233 = vrot.slane %v166, %v232
        %v234 = vcombine.low %v173, %v177
        %v235 = vcombine.low %v181, %v185
        %v236 = vcombine.low %v189, %v193
        %v237 = vcombine.low %v197, %v201
        %v239 = vunpack.c.l.s4 1966171168
        %v240 = vunpack.c.0.s8 %v239
        %v241 = vlaneseq
        %v242 = vshrl.u32 %v241, 7
        %v243 = vsub.s32 %v240, %v242
        %v244 = vrot.slane %v234, %v243
        %v246 = vunpack.c.l.s4 1966171168
        %v247 = vunpack.c.0.s8 %v246
        %v248 = vlaneseq
        %v249 = vshrl.u32 %v248, 7
        %v250 = vsub.s32 %v247, %v249
        %v251 = vrot.slane %v235, %v250
        %v253 = vunpack.c.l.s4 1966171168
        %v254 = vunpack.c.0.s8 %v253
        %v255 = vlaneseq
        %v256 = vshrl.u32 %v255, 7
        %v257 = vsub.s32 %v254, %v256
        %v258 = vrot.slane %v236, %v257
        %v260 = vunpack.c.l.s4 1966171168
        %v261 = vunpack.c.0.s8 %v260
        %v262 = vlaneseq
        %v263 = vshrl.u32 %v262, 7
        %v264 = vsub.s32 %v261, %v263
        %v265 = vrot.slane %v237, %v264
        %v266 = vcombine.low %v244, %v251
        %v267 = vcombine.low %v258, %v265
        %v269 = vunpack.c.l.s4 1966171168
        %v270 = vunpack.c.0.s8 %v269
        %v271 = vlaneseq
        %v272 = vshrl.u32 %v271, 7
        %v273 = vsub.s32 %v270, %v272
        %v274 = vrot.slane %v266, %v273
        %v276 = vunpack.c.l.s4 1966171168
        %v277 = vunpack.c.0.s8 %v276
        %v278 = vlaneseq
        %v279 = vshrl.u32 %v278, 7
        %v280 = vsub.s32 %v277, %v279
        %v281 = vrot.slane %v267, %v280
        %v282 = vcombine.low %v274, %v281
        %v283 = vcombine.low %v205, %v209
        %v284 = vcombine.low %v213, %v217
        %v285 = vcombine.low %v221, %v225
        %v286 = vcombine.low %v229, %v233
        %v288 = vunpack.c.l.s4 1966171168
        %v289 = vunpack.c.0.s8 %v288
        %v290 = vlaneseq
        %v291 = vshrl.u32 %v290, 7
        %v292 = vsub.s32 %v289, %v291
        %v293 = vrot.slane %v283, %v292
        %v295 = vunpack.c.l.s4 1966171168
        %v296 = vunpack.c.0.s8 %v295
        %v297 = vlaneseq
        %v298 = vshrl.u32 %v297, 7
        %v299 = vsub.s32 %v296, %v298
        %v300 = vrot.slane %v284, %v299
        %v302 = vunpack.c.l.s4 1966171168
        %v303 = vunpack.c.0.s8 %v302
        %v304 = vlaneseq
        %v305 = vshrl.u32 %v304, 7
        %v306 = vsub.s32 %v303, %v305
        %v307 = vrot.slane %v285, %v306
        %v309 = vunpack.c.l.s4 1966171168
        %v310 = vunpack.c.0.s8 %v309
        %v311 = vlaneseq
        %v312 = vshrl.u32 %v311, 7
        %v313 = vsub.s32 %v310, %v312
        %v314 = vrot.slane %v286, %v313
        %v315 = vcombine.low %v293, %v300
        %v316 = vcombine.low %v307, %v314
        %v318 = vunpack.c.l.s4 1966171168
        %v319 = vunpack.c.0.s8 %v318
        %v320 = vlaneseq
        %v321 = vshrl.u32 %v320, 7
        %v322 = vsub.s32 %v319, %v321
        %v323 = vrot.slane %v315, %v322
        %v325 = vunpack.c.l.s4 1966171168
        %v326 = vunpack.c.0.s8 %v325
        %v327 = vlaneseq
        %v328 = vshrl.u32 %v327, 7
        %v329 = vsub.s32 %v326, %v328
        %v330 = vrot.slane %v316, %v329
        %v331 = vcombine.low %v323, %v330
        %332 = vset.pattern.permute.xlu0 0
        %333 = vperm.xlu0 %332, %v282
        %v334 = vpop.permute.xlu0 %333
        %335 = vset.pattern.permute.xlu0 0
        %336 = vperm.xlu0 %335, %v331
        %v337 = vpop.permute.xlu0 %336
        %v338 = vlaneseq
        %v339 = vand.u32 %v338, 127
        %v340 = vlaneseq
        %v341 = vshrl.u32 %v340, 7
        %v342 = vsub.s32 %v339, %v341
        %v343 = vrot.slane %v334, %v342
        %v344 = vadd.s32 %v339, 4294967288
        %v345 = vlaneseq
        %v346 = vshrl.u32 %v345, 7
        %v347 = vsub.s32 %v344, %v346
        %v348 = vrot.slane %v337, %v347
        %vm349 = vcmask 130112
        %v350 = vsel %vm349, %v348, %v343
        %v352 = vunpack.c.l.s4 1966171168
        %v353 = vunpack.c.0.s8 %v352
        %v354 = vlaneseq
        %v355 = vshrl.u32 %v354, 7
        %v356 = vsub.s32 %v353, %v355
        %v357 = vrot.slane %v350, %v356
        %v359 = vunpack.c.l.s4 1966171168
        %v360 = vunpack.c.0.s8 %v359
        %v361 = vlaneseq
        %v362 = vshrl.u32 %v361, 7
        %v363 = vsub.s32 %v360, %v362
        %v364 = vrot.slane %v357, %v363
        %v366 = vadd.f32 %v167, %v364
        %vm367 = vcmask 122880
        %368 = vst.msk [vmem:[%s149] sm:$0x1] %vm367, %v366
        // Predicated region
        $region33: #{tpu_custom_call.1} parent=23 // pred_check
          %p369 = pneg %p151
        $region34: #{tpu_custom_call.1} parent=23 // pred_check_branch
          %371 = sbr.rel (%p369) target = $region36
        $region35: #{tpu_custom_call.1} parent=23 // pred_region
          %v372 = vld [vmem:[%s149] sm:$0x1]
          %v373 = vmul.f32 %v372, 0.00390625
          %374 = vst.msk [vmem:[%s149] sm:$0x1] %vm367, %v373
        $region36: #{tpu_custom_call.1} parent=23 // pred_fallthru
          _
        %s375 = sand.u32 %s66, 1
        %s376 = scalar_lea.sflag [#allocation4], %s375
        %s377 = sand.u32 %s66, 1
        %s378 = scalar_lea.vmem [#allocation5], %s377
        // Predicated region
        $region37: #{tpu_custom_call.1} parent=23 // pred_check
          %p379 = pneg %p76
        $region38: #{tpu_custom_call.1} parent=23 // pred_check_branch
          %381 = sbr.rel (%p379) target = $region40
        $region39: #{tpu_custom_call.1} parent=23 // pred_region
          %s383 = ssub.s32 16, 16
          %384 = vsyncadd %s376, %s383
          %s385 = smul.addr %s22, 16
          %s386 = scalar_lea.hbm %s1, %s385
          %s388 = sshll.u32 %s378, 4
          %s389 = int_to_ptr.vmem [resolvable:$true] %s388
          %391 = dma.vmem_to_hbm [thread:$0]  %s389, 16, %s386, %s376
        $region40: #{tpu_custom_call.1} parent=23 // pred_fallthru
          _
      $region24: #{tpu_custom_call.1} parent=5 // pred_fallthru
        _
      %p392 = scmp.le.s32.totalorder 2, %s13
      // Predicated region
      $region41: #{tpu_custom_call.1} parent=5 // pred_check
        %p393 = pneg %p392
      $region42: #{tpu_custom_call.1} parent=5 // pred_check_branch
        %395 = sbr.rel (%p393) target = $region44
      $region43: #{tpu_custom_call.1} parent=5 // pred_region
        %s396 = ssub.s32 %s13, 2
        // Predicated region
        $region45: #{tpu_custom_call.1} parent=43 // pred_check
          %p397 = pneg %p82
        $region46: #{tpu_custom_call.1} parent=43 // pred_check_branch
          %399 = sbr.rel (%p397) target = $region48
        $region47: #{tpu_custom_call.1} parent=43 // pred_region
          %s400 = sand.u32 %s67, 1
          %s401 = scalar_lea.sflag [#allocation4], %s400
          %s402 = sand.u32 %s67, 1
          %s403 = scalar_lea.vmem [#allocation5], %s402
          %404 = dma.done %s401, 16
        $region48: #{tpu_custom_call.1} parent=43 // pred_fallthru
          _
      $region44: #{tpu_custom_call.1} parent=5 // pred_fallthru
        _
    $region6: #{tpu_custom_call.1} parent=1 // loop_footer
      %s17 = sadd.s32 1, %s13
    $region7: #{tpu_custom_call.1} parent=1 // loop_footer_branch
      %12 = sbr.rel target = $region3
    $region8: #{tpu_custom_call.1} parent=1 // loop_exit
      _
    %405 = vsyncpa [#allocation3], 1
    %s406 = scalar_lea.sflag [#allocation3], 1
    %407 = vsyncpa %s406, 1
    %408 = vsyncpa [#allocation4], 1
    %s409 = scalar_lea.sflag [#allocation4], 1
    %410 = vsyncpa %s409, 1

</llo_original>
